<compile_context>
chip_gen: v7x
topology: tpu7x:2x2x1
jax: 0.10.0
libtpu: 0.0.40
codegen_flags: <defaults>
</compile_context>

<pallas_src>
import functools

import jax
import jax.numpy as jnp
from jax import lax
from jax.experimental import pallas as pl
from jax.experimental.pallas import tpu as pltpu


# ---------------------------------------------------------------------------
# Layout helpers (tiny arrays; one small XLA op each, no big transposes).
# ---------------------------------------------------------------------------
def _pack_state(state):
    """[B, 4] -> [2, 2B]; row 0 = flattened pos, row 1 = flattened vel."""
    B = state.shape[0]
    pos = state[:, 0:2].reshape(B * 2)
    vel = state[:, 2:4].reshape(B * 2)
    return jnp.stack([pos, vel], axis=0)


def _unpack_state(packed, B):
    """[2, 2B] -> [B, 4] = cat([pos, vel], dim=1)."""
    pos = packed[0].reshape(B, 2)
    vel = packed[1].reshape(B, 2)
    return jnp.concatenate([pos, vel], axis=1)


def _choose_time_chunk(seq, lane, itemsize, budget_bytes=6 << 20):
    """Largest divisor of `seq` whose double-buffered force+acc blocks fit the
    budget (conservative w.r.t. v5e 16 MiB / v6e 32 MiB / v7x 32 MiB scoped
    VMEM defaults). Prefer sublane-aligned (multiple of 8) chunks."""
    per_step = 4 * lane * itemsize          # 2x force buf + 2x acc buf per step
    cap = max(1, budget_bytes // per_step)
    if seq <= cap:
        return seq
    divs = set()
    i = 1
    while i * i <= seq:
        if seq % i == 0:
            divs.add(i)
            divs.add(seq // i)
        i += 1
    aligned = [d for d in divs if d <= cap and (d % 8 == 0 or d == seq)]
    if aligned:
        return max(aligned)
    return max(d for d in divs if d <= cap)


# ---------------------------------------------------------------------------
# Single-step kernel: Plant.forward on packed ([2, 2B] state, [1, 2B] force).
# ---------------------------------------------------------------------------
def _plant_step_kernel(state_ref, force_ref, out_state_ref, acc_ref,
                       *, c_pos, c_vel):
    """Exact PyTorch update order:
        acc = force - c_pos*pos - c_vel*vel   (from OLD pos/vel)
        vel += acc
        pos += vel                            (uses UPDATED vel)
    """
    pos = state_ref[0:1, :].astype(jnp.float32)
    vel = state_ref[1:2, :].astype(jnp.float32)
    force = force_ref[...].astype(jnp.float32)

    acc = force - c_pos * pos - c_vel * vel
    new_vel = vel + acc
    new_pos = pos + new_vel

    out_state_ref[0:1, :] = new_pos.astype(out_state_ref.dtype)
    out_state_ref[1:2, :] = new_vel.astype(out_state_ref.dtype)
    acc_ref[...] = acc.astype(acc_ref.dtype)


def plant_forward(state, force, *, tau, decay):
    """Plant.forward.  state: [B, 4], force: [B, 2]  ->  (new_state [B,4], acc [B,2])."""
    B = state.shape[0]
    lane = 2 * B
    c_pos = float((1.0 - decay) / (tau * tau))
    c_vel = float((1.0 - decay) / tau)

    state_p = _pack_state(state)           # [2, 2B]
    force_p = force.reshape(1, lane)       # free contiguous reshape

    kernel = functools.partial(_plant_step_kernel, c_pos=c_pos, c_vel=c_vel)
    new_state_p, acc_p = pl.pallas_call(
        kernel,
        out_shape=(
            jax.ShapeDtypeStruct((2, lane), state.dtype),
            jax.ShapeDtypeStruct((1, lane), state.dtype),
        ),
        # No grid: single program, full-array blocks resident in VMEM.
        in_specs=[
            pl.BlockSpec((2, lane), lambda: (0, 0)),
            pl.BlockSpec((1, lane), lambda: (0, 0)),
        ],
        out_specs=(
            pl.BlockSpec((2, lane), lambda: (0, 0)),
            pl.BlockSpec((1, lane), lambda: (0, 0)),
        ),
    )(state_p, force_p)
    return _unpack_state(new_state_p, B), acc_p.reshape(B, 2)


# ---------------------------------------------------------------------------
# Fused rollout: grid over time CHUNKS, recurrence state in two VMEM scratch
# rows (pos / vel), unrolled fori_loop inside each chunk.
# ---------------------------------------------------------------------------
def _plant_rollout_kernel(state0_ref, force_ref, out_state_ref, acc_ref,
                          pos_s, vel_s, *, c_pos, c_vel, t_chunk):
    c = pl.program_id(0)

    @pl.when(c == 0)
    def _():
        pos_s[...] = state0_ref[0:1, :].astype(jnp.float32)
        vel_s[...] = state0_ref[1:2, :].astype(jnp.float32)

    def body(t, carry):
        pos = pos_s[...]
        vel = vel_s[...]
        force = force_ref[pl.ds(t, 1), :].astype(jnp.float32)
        acc = force - c_pos * pos - c_vel * vel
        new_vel = vel + acc
        new_pos = pos + new_vel
        acc_ref[pl.ds(t, 1), :] = acc.astype(acc_ref.dtype)
        pos_s[...] = new_pos
        vel_s[...] = new_vel
        return carry

    lax.fori_loop(0, t_chunk, body, 0, unroll=min(t_chunk, 8))

    # Output block index is constant across the grid, so HBM writeback of the
    # final state happens only once; write unconditionally (no per-chunk guard).
    out_state_ref[0:1, :] = pos_s[...].astype(out_state_ref.dtype)
    out_state_ref[1:2, :] = vel_s[...].astype(out_state_ref.dtype)


def plant_rollout(state0, force_seq, *, tau, decay):
    """Apply Plant.forward SEQ times in one kernel.

    state0:    [B, 4]
    force_seq: [SEQ, B, 2]
    returns (final_state [B, 4], acc_seq [SEQ, B, 2])
    """
    SEQ, B, _ = force_seq.shape
    lane = 2 * B
    c_pos = float((1.0 - decay) / (tau * tau))
    c_vel = float((1.0 - decay) / tau)

    state0_p = _pack_state(state0)                 # [2, 2B]
    force_p = force_seq.reshape(SEQ, lane)         # free contiguous reshape

    t_chunk = _choose_time_chunk(SEQ, lane, jnp.dtype(force_seq.dtype).itemsize)
    n_chunks = SEQ // t_chunk

    kernel = functools.partial(_plant_rollout_kernel,
                               c_pos=c_pos, c_vel=c_vel, t_chunk=t_chunk)
    final_state_p, acc_p = pl.pallas_call(
        kernel,
        out_shape=(
            jax.ShapeDtypeStruct((2, lane), state0.dtype),
            jax.ShapeDtypeStruct((SEQ, lane), state0.dtype),
        ),
        grid_spec=pltpu.PrefetchScalarGridSpec(
            num_scalar_prefetch=0,
            grid=(n_chunks,),
            in_specs=[
                pl.BlockSpec((2, lane), lambda c: (0, 0)),        # state0 (resident)
                pl.BlockSpec((t_chunk, lane), lambda c: (c, 0)),  # force chunk c
            ],
            out_specs=(
                pl.BlockSpec((2, lane), lambda c: (0, 0)),        # final state
                pl.BlockSpec((t_chunk, lane), lambda c: (c, 0)),  # acc chunk c
            ),
            scratch_shapes=[pltpu.VMEM((1, lane), jnp.float32),   # pos carry
                            pltpu.VMEM((1, lane), jnp.float32)],  # vel carry
        ),
        compiler_params=pltpu.CompilerParams(
            # Time is a sequential recurrence.
            dimension_semantics=("arbitrary",),
        ),
    )(state0_p, force_p)
    # TODO(synk): for B*2 >= 256 on v7x, add a leading lane-split grid axis
    # marked "parallel" so both TensorCores each run the recurrence on half
    # the batch (re-derive t_chunk for the 64 MiB VMEM).
    return _unpack_state(final_state_p, B), acc_p.reshape(SEQ, B, 2)


# ---------------------------------------------------------------------------
# Host-side glue equivalent of Plant.initialize_state (deterministic via key).
# ---------------------------------------------------------------------------
def initialize_state(key, batch, seq_length, tau, amp=8.0, amp0=0.1):
    k_tgt, k_pos, k_vel = jax.random.split(key, 3)
    target_seq = amp * (jax.random.uniform(k_tgt, (seq_length, batch, 2)) - 0.5)
    pos = target_seq[0] + amp0 * (jax.random.uniform(k_pos, (batch, 2)) - 0.5)
    vel = (amp0 / tau) * (jax.random.uniform(k_vel, (batch, 2)) - 0.5)
    state_init = jnp.concatenate([pos, vel], axis=1).astype(jnp.float32)
    return state_init, target_seq


if __name__ == "__main__":
    key = jax.random.PRNGKey(0)
    B, SEQ = 8, 8
    tau, decay = 5.0, 0.9

    k_init, k_force = jax.random.split(key)
    state0, target_seq = initialize_state(k_init, B, SEQ, tau)
    force_seq = jax.random.normal(k_force, (SEQ, B, 2), dtype=jnp.float32)

    # Single forward step (matches Plant.forward one-to-one).
    new_state, acc = plant_forward(state0, force_seq[0], tau=tau, decay=decay)
    # Fused SEQ-step rollout (main perf path).
    final_state, acc_seq = plant_rollout(state0, force_seq, tau=tau, decay=decay)
    jax.block_until_ready((new_state, acc, final_state, acc_seq))

    # Pure-JAX reference of the exact PyTorch semantics (unfused divides).
    def ref_step(state, force):
        pos, vel = state[:, :2], state[:, 2:]
        a = force - (1.0 - decay) * pos / tau ** 2 - (1.0 - decay) * vel / tau
        vel = vel + a
        pos = pos + vel
        return jnp.concatenate([pos, vel], axis=1), a

    ref_state1, ref_acc1 = ref_step(state0, force_seq[0])
    assert jnp.allclose(new_state, ref_state1, atol=1e-5, rtol=1e-5)
    assert jnp.allclose(acc, ref_acc1, atol=1e-5, rtol=1e-5)

    s = state0
    ref_accs = []
    for t in range(SEQ):
        s, a = ref_step(s, force_seq[t])
        ref_accs.append(a)
    ref_accs = jnp.stack(ref_accs, axis=0)
    assert jnp.allclose(final_state, s, atol=1e-5, rtol=1e-5)
    assert jnp.allclose(acc_seq, ref_accs, atol=1e-5, rtol=1e-5)

    print("KERNEL_OK")
</pallas_src>

<mosaic_0001>
module attributes {stable_mosaic.version = 11 : i64} {
  func.func @_plant_step_kernel(%arg0: memref<2x16xf32, #tpu.memory_space<vmem>>, %arg1: memref<1x16xf32, #tpu.memory_space<vmem>>, %arg2: memref<2x16xf32, #tpu.memory_space<vmem>>, %arg3: memref<1x16xf32, #tpu.memory_space<vmem>>) attributes {dimension_semantics = [], scalar_prefetch = 0 : i64, scratch_operands = 0 : i64, tpu.core_type = #tpu.core_type<tc>} {
    %c0 = arith.constant 0 : index
    %c0_0 = arith.constant 0 : index
    %0 = vector.load %arg0[%c0, %c0_0] : memref<2x16xf32, #tpu.memory_space<vmem>>, vector<1x16xf32>
    %c1 = arith.constant 1 : index
    %c0_1 = arith.constant 0 : index
    %1 = vector.load %arg0[%c1, %c0_1] : memref<2x16xf32, #tpu.memory_space<vmem>>, vector<1x16xf32>
    %c0_2 = arith.constant 0 : index
    %c0_3 = arith.constant 0 : index
    %2 = vector.load %arg1[%c0_2, %c0_3] : memref<1x16xf32, #tpu.memory_space<vmem>>, vector<1x16xf32>
    %cst = arith.constant 4.000000e-03 : f32
    %3 = vector.broadcast %cst : f32 to vector<1x16xf32>
    %4 = arith.mulf %3, %0 : vector<1x16xf32>
    %5 = arith.subf %2, %4 : vector<1x16xf32>
    %cst_4 = arith.constant 2.000000e-02 : f32
    %6 = vector.broadcast %cst_4 : f32 to vector<1x16xf32>
    %7 = arith.mulf %6, %1 : vector<1x16xf32>
    %8 = arith.subf %5, %7 : vector<1x16xf32>
    %9 = arith.addf %1, %8 : vector<1x16xf32>
    %10 = arith.addf %0, %9 : vector<1x16xf32>
    %c0_5 = arith.constant 0 : index
    %c0_6 = arith.constant 0 : index
    %11 = vector.load %arg2[%c0_5, %c0_6] : memref<2x16xf32, #tpu.memory_space<vmem>>, vector<1x16xf32>
    tpu.vector_store %arg2[%c0_5, %c0_6], %10 {strides = array<i32>} : memref<2x16xf32, #tpu.memory_space<vmem>>, vector<1x16xf32>,
    %c1_7 = arith.constant 1 : index
    %c0_8 = arith.constant 0 : index
    %12 = vector.load %arg2[%c1_7, %c0_8] : memref<2x16xf32, #tpu.memory_space<vmem>>, vector<1x16xf32>
    tpu.vector_store %arg2[%c1_7, %c0_8], %9 {strides = array<i32>} : memref<2x16xf32, #tpu.memory_space<vmem>>, vector<1x16xf32>,
    %c0_9 = arith.constant 0 : index
    %c0_10 = arith.constant 0 : index
    %13 = vector.load %arg3[%c0_9, %c0_10] : memref<1x16xf32, #tpu.memory_space<vmem>>, vector<1x16xf32>
    tpu.vector_store %arg3[%c0_9, %c0_10], %8 {strides = array<i32>} : memref<1x16xf32, #tpu.memory_space<vmem>>, vector<1x16xf32>,
    return
  }
}

</mosaic_0001>

<llo_original>
// kernel: tpu_custom_call.1
$region0: #{tpu_custom_call.1}
  #allocation0 [shape = 'u32[]', space=smem, size = 0x4, offset = 0x4, fixed_abs, tag = 'smem constant byte address 0x4 - core index']
  #allocation1 [shape = 'u32[144,128]{1,0:T(1,128)}', space=vmem, size = 0x12000, scoped, tag = 'internal scratch']
  %s0 = inlined_call_operand.hbm [shape: f32[2,16], index: 0, kind: input, shape index: {}]
  %s1 = inlined_call_operand.vmem [shape: f32[1,16], index: 1, kind: input, shape index: {}]
  %s2 = inlined_call_operand.hbm [shape: f32[2,16], index: 2, kind: output, shape index: {0}]
  %s3 = inlined_call_operand.hbm [shape: f32[1,16], index: 3, kind: output, shape index: {1}]
  %4 = xla_tuple %s2, %s3
  %s5 = sld [smem:[#allocation0]]
  $region30: #{tpu_custom_call.1} parent=0
    _
  %s7 = ssub.s32 1, %s5
  %s8 = scalar_select 0, %s7, %s5
  $region1: #{tpu_custom_call.1} parent=0
    #allocation2 [shape = 'u8[1024]{0}', space=vmem, size = 0x400, scoped, tag = 'input window, operand 0, single buffered']
    #allocation3 [shape = 's32[1]{0}', space=sflag, size = 0x4, scoped, tag = 'scoped memory for tpu_custom_call.1']
    #allocation4 [shape = 's32[1]{0}', space=sflag, size = 0x4, scoped, tag = 'scoped memory for tpu_custom_call.1']
    #allocation5 [shape = 'u8[1024]{0}', space=vmem, size = 0x400, scoped, tag = 'output window, operand 0, single buffered']
    #allocation6 [shape = 'u8[512]{0}', space=vmem, size = 0x400, scoped, tag = 'output window, operand 1, single buffered']
    #allocation7 [shape = 's32[1]{0}', space=sflag, size = 0x4, scoped, tag = 'scoped memory for tpu_custom_call.1']
    %9 = vsyncpa [#allocation3], 0
    %10 = vsyncpa [#allocation4], 0
    %11 = vsyncpa [#allocation7], 0
    // Predicated region
    $region2: #{tpu_custom_call.1} parent=1 // pred_check
      _
    $region3: #{tpu_custom_call.1} parent=1 // pred_check_branch
      %13 = sbr.rel (0) target = $region5
    $region4: #{tpu_custom_call.1} parent=1 // pred_region
      %s15 = ssub.s32 32, 32
      %16 = vsyncadd [#allocation3], %s15
      %s18 = sshll.u32 [#allocation2], 4
      %s19 = int_to_ptr.vmem [resolvable:$true] %s18
      %21 = dma.hbm_to_vmem [thread:$0]  %s0, 32, %s19, [#allocation3]
    $region5: #{tpu_custom_call.1} parent=1 // pred_fallthru
      _
    // Predicated region
    $region6: #{tpu_custom_call.1} parent=1 // pred_check
      _
    $region7: #{tpu_custom_call.1} parent=1 // pred_check_branch
      %23 = sbr.rel (0) target = $region9
    $region8: #{tpu_custom_call.1} parent=1 // pred_region
      _
    $region9: #{tpu_custom_call.1} parent=1 // pred_fallthru
      _
    // Predicated region
    $region10: #{tpu_custom_call.1} parent=1 // pred_check
      _
    $region11: #{tpu_custom_call.1} parent=1 // pred_check_branch
      %25 = sbr.rel (0) target = $region13
    $region12: #{tpu_custom_call.1} parent=1 // pred_region
      %26 = dma.done [#allocation3], 32
    $region13: #{tpu_custom_call.1} parent=1 // pred_fallthru
      _
    %v27 = vld [vmem:[#allocation2] sm:$0x1]
    %v28 = vld [vmem:[#allocation2 + $0x1] sm:$0x1]
    %v29 = vld [vmem:[%s1] sm:$0x1]
    %v30 = vmul.f32 %v27, 0.004
    %v31 = vsub.f32 %v29, %v30
    %v32 = vmul.f32 %v28, 0.02
    %v33 = vsub.f32 %v31, %v32
    %v34 = vadd.f32 %v28, %v33
    %v35 = vadd.f32 %v27, %v34
    %vm36 = vcmask 122880
    %37 = vst.msk [vmem:[#allocation5] sm:$0x1] %vm36, %v35
    %38 = vst.msk [vmem:[#allocation5 + $0x1] sm:$0x1] %vm36, %v34
    %39 = vst.msk [vmem:[#allocation6] sm:$0x1] %vm36, %v33
    // Predicated region
    $region14: #{tpu_custom_call.1} parent=1 // pred_check
      _
    $region15: #{tpu_custom_call.1} parent=1 // pred_check_branch
      %41 = sbr.rel (0) target = $region17
    $region16: #{tpu_custom_call.1} parent=1 // pred_region
      %s43 = ssub.s32 32, 32
      %44 = vsyncadd [#allocation4], %s43
      %s46 = sshll.u32 [#allocation5], 4
      %s47 = int_to_ptr.vmem [resolvable:$true] %s46
      %49 = dma.vmem_to_hbm [thread:$0]  %s47, 32, %s2, [#allocation4]
    $region17: #{tpu_custom_call.1} parent=1 // pred_fallthru
      _
    // Predicated region
    $region18: #{tpu_custom_call.1} parent=1 // pred_check
      _
    $region19: #{tpu_custom_call.1} parent=1 // pred_check_branch
      %51 = sbr.rel (0) target = $region21
    $region20: #{tpu_custom_call.1} parent=1 // pred_region
      %s53 = ssub.s32 16, 16
      %54 = vsyncadd [#allocation7], %s53
      %s56 = sshll.u32 [#allocation6], 4
      %s57 = int_to_ptr.vmem [resolvable:$true] %s56
      %59 = dma.vmem_to_hbm [thread:$0]  %s57, 16, %s3, [#allocation7]
    $region21: #{tpu_custom_call.1} parent=1 // pred_fallthru
      _
    // Predicated region
    $region22: #{tpu_custom_call.1} parent=1 // pred_check
      _
    $region23: #{tpu_custom_call.1} parent=1 // pred_check_branch
      %61 = sbr.rel (0) target = $region25
    $region24: #{tpu_custom_call.1} parent=1 // pred_region
      %62 = dma.done [#allocation4], 32
    $region25: #{tpu_custom_call.1} parent=1 // pred_fallthru
      _
    // Predicated region
    $region26: #{tpu_custom_call.1} parent=1 // pred_check
      _
    $region27: #{tpu_custom_call.1} parent=1 // pred_check_branch
      %64 = sbr.rel (0) target = $region29
    $region28: #{tpu_custom_call.1} parent=1 // pred_region
      %65 = dma.done [#allocation7], 16
    $region29: #{tpu_custom_call.1} parent=1 // pred_fallthru
      _
    %66 = vsyncpa [#allocation3], 1
    %67 = vsyncpa [#allocation4], 1
    %68 = vsyncpa [#allocation7], 1

</llo_original>
